<compile_context>
chip_gen: v5e
topology: v5e:2x2
jax: 0.10.0
libtpu: 0.0.40
codegen_flags: <defaults>
</compile_context>

<pallas_src>
import jax
import jax.numpy as jnp
from jax.experimental import pallas as pl
from jax.experimental.pallas import tpu as pltpu


_MAX_BATCH_TILE = 4096  # rows per grid step at large B (multiple of 128)


def _round_up(v, m):
    return -(-v // m) * m


def _mlp_kernel(x_ref,
                w1, b1, w2, b2, w3, b3, w4, b4, w5, b5, w6, b6, w7, b7,
                o_ref):
    # [batch_tile, pc] -> [pc, batch_tile]: batch on the 128-lane axis,
    # small feature dims (4..64) on sublanes / the MXU's short side.
    # The transpose rides the XLU slot, which is idle in this kernel.
    h = x_ref[...].astype(jnp.float32).T

    def layer(h, w_ref, b_ref, relu):
        # MXU: bf16 operands, f32 accumulation (preferred_element_type).
        y = jnp.dot(w_ref[...], h.astype(w_ref.dtype),
                    preferred_element_type=jnp.float32)
        y = y + b_ref[...]            # [out, 1] broadcast across lanes, f32 VPU
        return jnp.maximum(y, 0.0) if relu else y

    h = layer(h, w1, b1, True)
    h = layer(h, w2, b2, True)
    h = layer(h, w3, b3, True)
    h = layer(h, w4, b4, True)
    h = layer(h, w5, b5, True)
    h = layer(h, w6, b6, True)
    y = layer(h, w7, b7, False)       # [op4_pad, batch_tile], no ReLU

    # Transpose back ([op4_pad, tile] -> [tile, op4_pad]; op4 was padded to a
    # multiple of 8 in the wrapper, so both transposes in this kernel are
    # clean sublane-granule ops) and store the valid columns directly into
    # the [B, op4] output: avoids a wrapper-side XLA transpose pass over the
    # output at the cost of a few masked 4-of-128-lane stores that hide under
    # MXU slack.
    yt = y.T
    o_ref[...] = yt[:, : o_ref.shape[1]].astype(o_ref.dtype)


def damage_nn_forward(x, params, *, batch_tile=None,
                      vmem_limit_bytes=32 * 1024 * 1024):
    """x: [B, pc] float. params: 7 (W [out, in], b [out, 1]) pairs in PyTorch
    nn.Linear layout. Returns [B, op4] float32."""
    assert x.ndim == 2
    B, pc = x.shape
    assert len(params) == 7
    op4 = params[-1][0].shape[0]

    # ---- batch tile selection --------------------------------------------
    if batch_tile is None:
        b128 = _round_up(B, 128)
        if b128 <= 2048:
            batch_tile = b128                      # single tile
        elif b128 <= 2 * _MAX_BATCH_TILE:
            # Exactly two tiles: big enough to amortize per-step overhead and
            # lets ("parallel",) shard across both v7x TensorCores.
            batch_tile = _round_up(pl.cdiv(b128, 2), 128)
        else:
            batch_tile = _MAX_BATCH_TILE
    grid = pl.cdiv(B, batch_tile)
    if grid > 1:
        # Blocked lane/sublane dims must be 128/8-aligned; round up instead of
        # failing on user-supplied tiles like 100 (last block may run past B,
        # which Pallas masks).
        batch_tile = _round_up(batch_tile, 128)
        grid = pl.cdiv(B, batch_tile)
    if grid == 1:
        batch_tile = B                             # full-array block: always legal

    # ---- parameters: bf16 weights (MXU-native, half the DMA), f32 biases --
    # Pad the final layer's rows up to a multiple of 8 so the in-kernel output
    # transpose is sublane-granule friendly; padded rows are zero and sliced
    # off inside the kernel.
    op4_pad = _round_up(op4, 8)
    flat_params = []
    n_layers = len(params)
    for li, (w, b) in enumerate(params):
        if li == n_layers - 1 and op4_pad != op4:
            w = jnp.pad(w, ((0, op4_pad - op4), (0, 0)))
            b = jnp.pad(b, ((0, op4_pad - op4), (0, 0)))
        flat_params.append(w.astype(jnp.bfloat16))
        flat_params.append(b.astype(jnp.float32))

    # ---- specs ------------------------------------------------------------
    wb_mode = pl.Buffered(1)                       # grid-invariant -> single buffer
    in_specs = [pl.BlockSpec((batch_tile, pc), lambda i: (i, 0))]
    for idx in range(0, len(flat_params), 2):
        w, b = flat_params[idx], flat_params[idx + 1]
        in_specs.append(pl.BlockSpec(w.shape, lambda i: (0, 0),
                                     pipeline_mode=wb_mode))
        in_specs.append(pl.BlockSpec(b.shape, lambda i: (0, 0),
                                     pipeline_mode=wb_mode))
    out_spec = pl.BlockSpec((batch_tile, op4), lambda i: (i, 0))

    # Advisory cost so XLA can schedule surrounding work around the call.
    flops = 2 * B * sum(int(w.shape[0]) * int(w.shape[1]) for w, _ in params)
    bytes_accessed = (int(x.size) * x.dtype.itemsize
                      + B * op4 * 4
                      + sum(int(p.size) * p.dtype.itemsize for p in flat_params))
    cost = pl.CostEstimate(flops=flops, transcendentals=0,
                           bytes_accessed=int(bytes_accessed))

    return pl.pallas_call(
        _mlp_kernel,
        out_shape=jax.ShapeDtypeStruct((B, op4), jnp.float32),
        grid_spec=pltpu.PrefetchScalarGridSpec(
            num_scalar_prefetch=0,
            grid=(grid,),
            in_specs=in_specs,
            out_specs=out_spec,
        ),
        compiler_params=pltpu.CompilerParams(
            dimension_semantics=("parallel",),
            vmem_limit_bytes=vmem_limit_bytes),
        cost_estimate=cost,
    )(x, *flat_params)


def _init_params(key, sizes):
    """PyTorch-style U(-1/sqrt(fan_in), 1/sqrt(fan_in)) init; W is [out, in]."""
    params = []
    for fan_in, fan_out in zip(sizes[:-1], sizes[1:]):
        key, kw, kb = jax.random.split(key, 3)
        bound = 1.0 / jnp.sqrt(jnp.float32(fan_in))
        w = jax.random.uniform(kw, (fan_out, fan_in), jnp.float32, -bound, bound)
        b = jax.random.uniform(kb, (fan_out, 1), jnp.float32, -bound, bound)
        params.append((w, b))
    return params


def _reference_forward(x, params, *, mxu_dtype=jnp.float32):
    """Plain-JAX reference (PyTorch semantics: y = x @ W.T + b).
    mxu_dtype=bfloat16 reproduces the kernel's operand casting exactly."""
    h = x
    n = len(params)
    for i, (w, b) in enumerate(params):
        h = jnp.dot(h.astype(mxu_dtype), w.astype(mxu_dtype).T,
                    preferred_element_type=jnp.float32) + b.reshape(1, -1)
        if i < n - 1:
            h = jnp.maximum(h, 0.0)
    return h


if __name__ == "__main__":
    # Module sizes: pc, l1..l6, op4
    pc, l1, l2, l3, l4, l5, l6, op4 = 16, 32, 64, 64, 32, 32, 16, 4
    sizes = [pc, l1, l2, l3, l4, l5, l6, op4]

    key = jax.random.PRNGKey(0)
    key, kx = jax.random.split(key)
    params = _init_params(key, sizes)

    # 1) Small single-tile check (grid=1, full-array blocks).
    batch = 8
    x = jax.random.normal(kx, (batch, pc), jnp.float32)
    out = jax.block_until_ready(damage_nn_forward(x, params))
    assert out.shape == (batch, op4)
    ref_bf16 = _reference_forward(x, params, mxu_dtype=jnp.bfloat16)
    ref_f32 = _reference_forward(x, params, mxu_dtype=jnp.float32)
    assert jnp.allclose(out, ref_bf16, atol=2e-3, rtol=2e-3), \
        "mismatch vs bf16-matched reference"
    assert jnp.allclose(out, ref_f32, atol=5e-2, rtol=5e-2), \
        "mismatch vs f32 reference"

    # 2) Multi-tile, evenly divisible batch (grid=4).
    key, kx2 = jax.random.split(key)
    x2 = jax.random.normal(kx2, (512, pc), jnp.float32)
    out2 = jax.block_until_ready(damage_nn_forward(x2, params, batch_tile=128))
    assert out2.shape == (512, op4)
    ref2 = _reference_forward(x2, params, mxu_dtype=jnp.bfloat16)
    assert jnp.allclose(out2, ref2, atol=2e-3, rtol=2e-3), \
        "mismatch on divisible multi-tile path"

    # 3) Multi-tile ragged batch (grid=2; last block runs past B=200 and is
    #    handled by Pallas' out-of-bounds read/write masking).
    key, kx3 = jax.random.split(key)
    x3 = jax.random.normal(kx3, (200, pc), jnp.float32)
    out3 = jax.block_until_ready(damage_nn_forward(x3, params, batch_tile=128))
    assert out3.shape == (200, op4)
    ref3 = _reference_forward(x3, params, mxu_dtype=jnp.bfloat16)
    assert jnp.allclose(out3, ref3, atol=2e-3, rtol=2e-3), \
        "mismatch on ragged multi-tile path"

    print("KERNEL_OK")
</pallas_src>

<mosaic_0001>
module attributes {stable_mosaic.version = 11 : i64} {
  func.func @_mlp_kernel(%arg0: i32, %arg1: memref<8x16xf32, #tpu.memory_space<vmem>>, %arg2: memref<32x16xbf16, #tpu.memory_space<vmem>>, %arg3: memref<32x1xf32, #tpu.memory_space<vmem>>, %arg4: memref<64x32xbf16, #tpu.memory_space<vmem>>, %arg5: memref<64x1xf32, #tpu.memory_space<vmem>>, %arg6: memref<64x64xbf16, #tpu.memory_space<vmem>>, %arg7: memref<64x1xf32, #tpu.memory_space<vmem>>, %arg8: memref<32x64xbf16, #tpu.memory_space<vmem>>, %arg9: memref<32x1xf32, #tpu.memory_space<vmem>>, %arg10: memref<32x32xbf16, #tpu.memory_space<vmem>>, %arg11: memref<32x1xf32, #tpu.memory_space<vmem>>, %arg12: memref<16x32xbf16, #tpu.memory_space<vmem>>, %arg13: memref<16x1xf32, #tpu.memory_space<vmem>>, %arg14: memref<8x16xbf16, #tpu.memory_space<vmem>>, %arg15: memref<8x1xf32, #tpu.memory_space<vmem>>, %arg16: memref<8x4xf32, #tpu.memory_space<vmem>>) attributes {dimension_semantics = [#tpu.dimension_semantics<parallel>], iteration_bounds = array<i64: 1>, scalar_prefetch = 0 : i64, scratch_operands = 0 : i64, tpu.core_type = #tpu.core_type<tc>, window_params = [{transform_indices = @transform_0, window_bounds = array<i64: 8, 16>}, {pipeline_mode = #tpu.pipeline_mode<synchronous>, transform_indices = @transform_1, window_bounds = array<i64: 32, 16>}, {pipeline_mode = #tpu.pipeline_mode<synchronous>, transform_indices = @transform_2, window_bounds = array<i64: 32, 1>}, {pipeline_mode = #tpu.pipeline_mode<synchronous>, transform_indices = @transform_3, window_bounds = array<i64: 64, 32>}, {pipeline_mode = #tpu.pipeline_mode<synchronous>, transform_indices = @transform_4, window_bounds = array<i64: 64, 1>}, {pipeline_mode = #tpu.pipeline_mode<synchronous>, transform_indices = @transform_5, window_bounds = array<i64: 64, 64>}, {pipeline_mode = #tpu.pipeline_mode<synchronous>, transform_indices = @transform_6, window_bounds = array<i64: 64, 1>}, {pipeline_mode = #tpu.pipeline_mode<synchronous>, transform_indices = @transform_7, window_bounds = array<i64: 32, 64>}, {pipeline_mode = #tpu.pipeline_mode<synchronous>, transform_indices = @transform_8, window_bounds = array<i64: 32, 1>}, {pipeline_mode = #tpu.pipeline_mode<synchronous>, transform_indices = @transform_9, window_bounds = array<i64: 32, 32>}, {pipeline_mode = #tpu.pipeline_mode<synchronous>, transform_indices = @transform_10, window_bounds = array<i64: 32, 1>}, {pipeline_mode = #tpu.pipeline_mode<synchronous>, transform_indices = @transform_11, window_bounds = array<i64: 16, 32>}, {pipeline_mode = #tpu.pipeline_mode<synchronous>, transform_indices = @transform_12, window_bounds = array<i64: 16, 1>}, {pipeline_mode = #tpu.pipeline_mode<synchronous>, transform_indices = @transform_13, window_bounds = array<i64: 8, 16>}, {pipeline_mode = #tpu.pipeline_mode<synchronous>, transform_indices = @transform_14, window_bounds = array<i64: 8, 1>}, {transform_indices = @transform_15, window_bounds = array<i64: 8, 4>}]} {
    %c0 = arith.constant 0 : index
    %c0_0 = arith.constant 0 : index
    %0 = vector.load %arg1[%c0, %c0_0] : memref<8x16xf32, #tpu.memory_space<vmem>>, vector<8x16xf32>
    %1 = tpu.transpose %0, [1, 0] : vector<8x16xf32> -> vector<16x8xf32>
    %c0_1 = arith.constant 0 : index
    %c0_2 = arith.constant 0 : index
    %2 = vector.load %arg2[%c0_1, %c0_2] : memref<32x16xbf16, #tpu.memory_space<vmem>>, vector<32x16xbf16>
    %3 = arith.truncf %1 : vector<16x8xf32> to vector<16x8xbf16>
    %cst = arith.constant dense<0.000000e+00> : vector<32x8xf32>
    %4 = tpu.matmul %2, %3, %cst {dimension_numbers = #tpu.dot_dimension_numbers<[1], [0], [0], [1], [0, 0, 1, 1], [], []>} : vector<32x16xbf16>, vector<16x8xbf16>, vector<32x8xf32> -> vector<32x8xf32>
    %c0_3 = arith.constant 0 : index
    %c0_4 = arith.constant 0 : index
    %5 = vector.load %arg3[%c0_3, %c0_4] : memref<32x1xf32, #tpu.memory_space<vmem>>, vector<32x1xf32>
    %6 = vector.broadcast %5 : vector<32x1xf32> to vector<32x8xf32>
    %7 = arith.addf %4, %6 : vector<32x8xf32>
    %cst_5 = arith.constant 0.000000e+00 : f32
    %8 = vector.broadcast %cst_5 : f32 to vector<32x8xf32>
    %9 = arith.maximumf %7, %8 : vector<32x8xf32>
    %c0_6 = arith.constant 0 : index
    %c0_7 = arith.constant 0 : index
    %10 = vector.load %arg4[%c0_6, %c0_7] : memref<64x32xbf16, #tpu.memory_space<vmem>>, vector<64x32xbf16>
    %11 = arith.truncf %9 : vector<32x8xf32> to vector<32x8xbf16>
    %cst_8 = arith.constant dense<0.000000e+00> : vector<64x8xf32>
    %12 = tpu.matmul %10, %11, %cst_8 {dimension_numbers = #tpu.dot_dimension_numbers<[1], [0], [0], [1], [0, 0, 1, 1], [], []>} : vector<64x32xbf16>, vector<32x8xbf16>, vector<64x8xf32> -> vector<64x8xf32>
    %c0_9 = arith.constant 0 : index
    %c0_10 = arith.constant 0 : index
    %13 = vector.load %arg5[%c0_9, %c0_10] : memref<64x1xf32, #tpu.memory_space<vmem>>, vector<64x1xf32>
    %14 = vector.broadcast %13 : vector<64x1xf32> to vector<64x8xf32>
    %15 = arith.addf %12, %14 : vector<64x8xf32>
    %cst_11 = arith.constant 0.000000e+00 : f32
    %16 = vector.broadcast %cst_11 : f32 to vector<64x8xf32>
    %17 = arith.maximumf %15, %16 : vector<64x8xf32>
    %c0_12 = arith.constant 0 : index
    %c0_13 = arith.constant 0 : index
    %18 = vector.load %arg6[%c0_12, %c0_13] : memref<64x64xbf16, #tpu.memory_space<vmem>>, vector<64x64xbf16>
    %19 = arith.truncf %17 : vector<64x8xf32> to vector<64x8xbf16>
    %cst_14 = arith.constant dense<0.000000e+00> : vector<64x8xf32>
    %20 = tpu.matmul %18, %19, %cst_14 {dimension_numbers = #tpu.dot_dimension_numbers<[1], [0], [0], [1], [0, 0, 1, 1], [], []>} : vector<64x64xbf16>, vector<64x8xbf16>, vector<64x8xf32> -> vector<64x8xf32>
    %c0_15 = arith.constant 0 : index
    %c0_16 = arith.constant 0 : index
    %21 = vector.load %arg7[%c0_15, %c0_16] : memref<64x1xf32, #tpu.memory_space<vmem>>, vector<64x1xf32>
    %22 = vector.broadcast %21 : vector<64x1xf32> to vector<64x8xf32>
    %23 = arith.addf %20, %22 : vector<64x8xf32>
    %cst_17 = arith.constant 0.000000e+00 : f32
    %24 = vector.broadcast %cst_17 : f32 to vector<64x8xf32>
    %25 = arith.maximumf %23, %24 : vector<64x8xf32>
    %c0_18 = arith.constant 0 : index
    %c0_19 = arith.constant 0 : index
    %26 = vector.load %arg8[%c0_18, %c0_19] : memref<32x64xbf16, #tpu.memory_space<vmem>>, vector<32x64xbf16>
    %27 = arith.truncf %25 : vector<64x8xf32> to vector<64x8xbf16>
    %cst_20 = arith.constant dense<0.000000e+00> : vector<32x8xf32>
    %28 = tpu.matmul %26, %27, %cst_20 {dimension_numbers = #tpu.dot_dimension_numbers<[1], [0], [0], [1], [0, 0, 1, 1], [], []>} : vector<32x64xbf16>, vector<64x8xbf16>, vector<32x8xf32> -> vector<32x8xf32>
    %c0_21 = arith.constant 0 : index
    %c0_22 = arith.constant 0 : index
    %29 = vector.load %arg9[%c0_21, %c0_22] : memref<32x1xf32, #tpu.memory_space<vmem>>, vector<32x1xf32>
    %30 = vector.broadcast %29 : vector<32x1xf32> to vector<32x8xf32>
    %31 = arith.addf %28, %30 : vector<32x8xf32>
    %cst_23 = arith.constant 0.000000e+00 : f32
    %32 = vector.broadcast %cst_23 : f32 to vector<32x8xf32>
    %33 = arith.maximumf %31, %32 : vector<32x8xf32>
    %c0_24 = arith.constant 0 : index
    %c0_25 = arith.constant 0 : index
    %34 = vector.load %arg10[%c0_24, %c0_25] : memref<32x32xbf16, #tpu.memory_space<vmem>>, vector<32x32xbf16>
    %35 = arith.truncf %33 : vector<32x8xf32> to vector<32x8xbf16>
    %cst_26 = arith.constant dense<0.000000e+00> : vector<32x8xf32>
    %36 = tpu.matmul %34, %35, %cst_26 {dimension_numbers = #tpu.dot_dimension_numbers<[1], [0], [0], [1], [0, 0, 1, 1], [], []>} : vector<32x32xbf16>, vector<32x8xbf16>, vector<32x8xf32> -> vector<32x8xf32>
    %c0_27 = arith.constant 0 : index
    %c0_28 = arith.constant 0 : index
    %37 = vector.load %arg11[%c0_27, %c0_28] : memref<32x1xf32, #tpu.memory_space<vmem>>, vector<32x1xf32>
    %38 = vector.broadcast %37 : vector<32x1xf32> to vector<32x8xf32>
    %39 = arith.addf %36, %38 : vector<32x8xf32>
    %cst_29 = arith.constant 0.000000e+00 : f32
    %40 = vector.broadcast %cst_29 : f32 to vector<32x8xf32>
    %41 = arith.maximumf %39, %40 : vector<32x8xf32>
    %c0_30 = arith.constant 0 : index
    %c0_31 = arith.constant 0 : index
    %42 = vector.load %arg12[%c0_30, %c0_31] : memref<16x32xbf16, #tpu.memory_space<vmem>>, vector<16x32xbf16>
    %43 = arith.truncf %41 : vector<32x8xf32> to vector<32x8xbf16>
    %cst_32 = arith.constant dense<0.000000e+00> : vector<16x8xf32>
    %44 = tpu.matmul %42, %43, %cst_32 {dimension_numbers = #tpu.dot_dimension_numbers<[1], [0], [0], [1], [0, 0, 1, 1], [], []>} : vector<16x32xbf16>, vector<32x8xbf16>, vector<16x8xf32> -> vector<16x8xf32>
    %c0_33 = arith.constant 0 : index
    %c0_34 = arith.constant 0 : index
    %45 = vector.load %arg13[%c0_33, %c0_34] : memref<16x1xf32, #tpu.memory_space<vmem>>, vector<16x1xf32>
    %46 = vector.broadcast %45 : vector<16x1xf32> to vector<16x8xf32>
    %47 = arith.addf %44, %46 : vector<16x8xf32>
    %cst_35 = arith.constant 0.000000e+00 : f32
    %48 = vector.broadcast %cst_35 : f32 to vector<16x8xf32>
    %49 = arith.maximumf %47, %48 : vector<16x8xf32>
    %c0_36 = arith.constant 0 : index
    %c0_37 = arith.constant 0 : index
    %50 = vector.load %arg14[%c0_36, %c0_37] : memref<8x16xbf16, #tpu.memory_space<vmem>>, vector<8x16xbf16>
    %51 = arith.truncf %49 : vector<16x8xf32> to vector<16x8xbf16>
    %cst_38 = arith.constant dense<0.000000e+00> : vector<8x8xf32>
    %52 = tpu.matmul %50, %51, %cst_38 {dimension_numbers = #tpu.dot_dimension_numbers<[1], [0], [0], [1], [0, 0, 1, 1], [], []>} : vector<8x16xbf16>, vector<16x8xbf16>, vector<8x8xf32> -> vector<8x8xf32>
    %c0_39 = arith.constant 0 : index
    %c0_40 = arith.constant 0 : index
    %53 = vector.load %arg15[%c0_39, %c0_40] : memref<8x1xf32, #tpu.memory_space<vmem>>, vector<8x1xf32>
    %54 = vector.broadcast %53 : vector<8x1xf32> to vector<8x8xf32>
    %55 = arith.addf %52, %54 : vector<8x8xf32>
    %56 = tpu.transpose %55, [1, 0] : vector<8x8xf32> -> vector<8x8xf32>
    %57 = vector.extract_strided_slice %56 {offsets = [0, 0], sizes = [8, 4], strides = [1, 1]} : vector<8x8xf32> to vector<8x4xf32>
    %c0_41 = arith.constant 0 : index
    %c0_42 = arith.constant 0 : index
    %58 = vector.load %arg16[%c0_41, %c0_42] : memref<8x4xf32, #tpu.memory_space<vmem>>, vector<8x4xf32>
    tpu.vector_store %arg16[%c0_41, %c0_42], %57 {strides = array<i32>} : memref<8x4xf32, #tpu.memory_space<vmem>>, vector<8x4xf32>,
    return
  }
  func.func @transform_0(%arg0: i32) -> (i32, i32) {
    %c0_i32 = arith.constant 0 : i32
    %c0_i32_0 = arith.constant 0 : i32
    return %arg0, %c0_i32 : i32, i32
  }
  func.func @transform_1(%arg0: i32) -> (i32, i32) {
    %c0_i32 = arith.constant 0 : i32
    %c0_i32_0 = arith.constant 0 : i32
    %c0_i32_1 = arith.constant 0 : i32
    return %c0_i32, %c0_i32_0 : i32, i32
  }
  func.func @transform_2(%arg0: i32) -> (i32, i32) {
    %c0_i32 = arith.constant 0 : i32
    %c0_i32_0 = arith.constant 0 : i32
    %c0_i32_1 = arith.constant 0 : i32
    return %c0_i32, %c0_i32_0 : i32, i32
  }
  func.func @transform_3(%arg0: i32) -> (i32, i32) {
    %c0_i32 = arith.constant 0 : i32
    %c0_i32_0 = arith.constant 0 : i32
    %c0_i32_1 = arith.constant 0 : i32
    return %c0_i32, %c0_i32_0 : i32, i32
  }
  func.func @transform_4(%arg0: i32) -> (i32, i32) {
    %c0_i32 = arith.constant 0 : i32
    %c0_i32_0 = arith.constant 0 : i32
    %c0_i32_1 = arith.constant 0 : i32
    return %c0_i32, %c0_i32_0 : i32, i32
  }
  func.func @transform_5(%arg0: i32) -> (i32, i32) {
    %c0_i32 = arith.constant 0 : i32
    %c0_i32_0 = arith.constant 0 : i32
    %c0_i32_1 = arith.constant 0 : i32
    return %c0_i32, %c0_i32_0 : i32, i32
  }
  func.func @transform_6(%arg0: i32) -> (i32, i32) {
    %c0_i32 = arith.constant 0 : i32
    %c0_i32_0 = arith.constant 0 : i32
    %c0_i32_1 = arith.constant 0 : i32
    return %c0_i32, %c0_i32_0 : i32, i32
  }
  func.func @transform_7(%arg0: i32) -> (i32, i32) {
    %c0_i32 = arith.constant 0 : i32
    %c0_i32_0 = arith.constant 0 : i32
    %c0_i32_1 = arith.constant 0 : i32
    return %c0_i32, %c0_i32_0 : i32, i32
  }
  func.func @transform_8(%arg0: i32) -> (i32, i32) {
    %c0_i32 = arith.constant 0 : i32
    %c0_i32_0 = arith.constant 0 : i32
    %c0_i32_1 = arith.constant 0 : i32
    return %c0_i32, %c0_i32_0 : i32, i32
  }
  func.func @transform_9(%arg0: i32) -> (i32, i32) {
    %c0_i32 = arith.constant 0 : i32
    %c0_i32_0 = arith.constant 0 : i32
    %c0_i32_1 = arith.constant 0 : i32
    return %c0_i32, %c0_i32_0 : i32, i32
  }
  func.func @transform_10(%arg0: i32) -> (i32, i32) {
    %c0_i32 = arith.constant 0 : i32
    %c0_i32_0 = arith.constant 0 : i32
    %c0_i32_1 = arith.constant 0 : i32
    return %c0_i32, %c0_i32_0 : i32, i32
  }
  func.func @transform_11(%arg0: i32) -> (i32, i32) {
    %c0_i32 = arith.constant 0 : i32
    %c0_i32_0 = arith.constant 0 : i32
    %c0_i32_1 = arith.constant 0 : i32
    return %c0_i32, %c0_i32_0 : i32, i32
  }
  func.func @transform_12(%arg0: i32) -> (i32, i32) {
    %c0_i32 = arith.constant 0 : i32
    %c0_i32_0 = arith.constant 0 : i32
    %c0_i32_1 = arith.constant 0 : i32
    return %c0_i32, %c0_i32_0 : i32, i32
  }
  func.func @transform_13(%arg0: i32) -> (i32, i32) {
    %c0_i32 = arith.constant 0 : i32
    %c0_i32_0 = arith.constant 0 : i32
    %c0_i32_1 = arith.constant 0 : i32
    return %c0_i32, %c0_i32_0 : i32, i32
  }
  func.func @transform_14(%arg0: i32) -> (i32, i32) {
    %c0_i32 = arith.constant 0 : i32
    %c0_i32_0 = arith.constant 0 : i32
    %c0_i32_1 = arith.constant 0 : i32
    return %c0_i32, %c0_i32_0 : i32, i32
  }
  func.func @transform_15(%arg0: i32) -> (i32, i32) {
    %c0_i32 = arith.constant 0 : i32
    %c0_i32_0 = arith.constant 0 : i32
    return %arg0, %c0_i32 : i32, i32
  }
}

</mosaic_0001>

<llo_original>
// kernel: tpu_custom_call.1
$region0: #{tpu_custom_call.1}
  #allocation0 [shape = 'u32[]', space=smem, size = 0x4, offset = 0x4, fixed_abs, tag = 'smem constant byte address 0x4 - core index']
  #allocation1 [shape = 'u32[72,128]{1,0:T(1,128)}', space=vmem, size = 0x9000, scoped, tag = 'internal scratch']
  %s0 = inlined_call_operand.vmem [shape: f32[8,16], index: 0, kind: input, shape index: {}]
  %s1 = inlined_call_operand.vmem [shape: bf16[32,16], index: 1, kind: input, shape index: {}]
  %s2 = inlined_call_operand.vmem [shape: f32[32,1], index: 2, kind: input, shape index: {}]
  %s3 = inlined_call_operand.vmem [shape: bf16[64,32], index: 3, kind: input, shape index: {}]
  %s4 = inlined_call_operand.vmem [shape: f32[64,1], index: 4, kind: input, shape index: {}]
  %s5 = inlined_call_operand.vmem [shape: bf16[64,64], index: 5, kind: input, shape index: {}]
  %s6 = inlined_call_operand.vmem [shape: f32[64,1], index: 6, kind: input, shape index: {}]
  %s7 = inlined_call_operand.vmem [shape: bf16[32,64], index: 7, kind: input, shape index: {}]
  %s8 = inlined_call_operand.vmem [shape: f32[32,1], index: 8, kind: input, shape index: {}]
  %s9 = inlined_call_operand.vmem [shape: bf16[32,32], index: 9, kind: input, shape index: {}]
  %s10 = inlined_call_operand.vmem [shape: f32[32,1], index: 10, kind: input, shape index: {}]
  %s11 = inlined_call_operand.vmem [shape: bf16[16,32], index: 11, kind: input, shape index: {}]
  %s12 = inlined_call_operand.vmem [shape: f32[16,1], index: 12, kind: input, shape index: {}]
  %s13 = inlined_call_operand.vmem [shape: bf16[8,16], index: 13, kind: input, shape index: {}]
  %s14 = inlined_call_operand.vmem [shape: f32[8,1], index: 14, kind: input, shape index: {}]
  %s15 = inlined_call_operand.vmem [shape: f32[8,4], index: 15, kind: output, shape index: {}]
  %s16 = sld [smem:[#allocation0]]
  $region70: #{tpu_custom_call.1} parent=0
    _
  %s18 = ssub.s32 1, %s16
  %s19 = scalar_select 0, %s18, %s16
  // Predicated region
  $region2: #{tpu_custom_call.1} parent=0 // pred_check
    _
  $region3: #{tpu_custom_call.1} parent=0 // pred_check_branch
    %21 = sbr.rel (0) target = $region5
  $region4: #{tpu_custom_call.1} parent=0 // pred_region
    _
  $region5: #{tpu_custom_call.1} parent=0 // pred_fallthru
    _
  // Predicated region
  $region6: #{tpu_custom_call.1} parent=0 // pred_check
    _
  $region7: #{tpu_custom_call.1} parent=0 // pred_check_branch
    %23 = sbr.rel (0) target = $region9
  $region8: #{tpu_custom_call.1} parent=0 // pred_region
    _
  $region9: #{tpu_custom_call.1} parent=0 // pred_fallthru
    _
  // Predicated region
  $region10: #{tpu_custom_call.1} parent=0 // pred_check
    _
  $region11: #{tpu_custom_call.1} parent=0 // pred_check_branch
    %25 = sbr.rel (0) target = $region13
  $region12: #{tpu_custom_call.1} parent=0 // pred_region
    _
  $region13: #{tpu_custom_call.1} parent=0 // pred_fallthru
    _
  // Predicated region
  $region14: #{tpu_custom_call.1} parent=0 // pred_check
    _
  $region15: #{tpu_custom_call.1} parent=0 // pred_check_branch
    %27 = sbr.rel (0) target = $region17
  $region16: #{tpu_custom_call.1} parent=0 // pred_region
    _
  $region17: #{tpu_custom_call.1} parent=0 // pred_fallthru
    _
  // Predicated region
  $region18: #{tpu_custom_call.1} parent=0 // pred_check
    _
  $region19: #{tpu_custom_call.1} parent=0 // pred_check_branch
    %29 = sbr.rel (0) target = $region21
  $region20: #{tpu_custom_call.1} parent=0 // pred_region
    _
  $region21: #{tpu_custom_call.1} parent=0 // pred_fallthru
    _
  // Predicated region
  $region22: #{tpu_custom_call.1} parent=0 // pred_check
    _
  $region23: #{tpu_custom_call.1} parent=0 // pred_check_branch
    %31 = sbr.rel (0) target = $region25
  $region24: #{tpu_custom_call.1} parent=0 // pred_region
    _
  $region25: #{tpu_custom_call.1} parent=0 // pred_fallthru
    _
  // Predicated region
  $region26: #{tpu_custom_call.1} parent=0 // pred_check
    _
  $region27: #{tpu_custom_call.1} parent=0 // pred_check_branch
    %33 = sbr.rel (0) target = $region29
  $region28: #{tpu_custom_call.1} parent=0 // pred_region
    _
  $region29: #{tpu_custom_call.1} parent=0 // pred_fallthru
    _
  // Predicated region
  $region30: #{tpu_custom_call.1} parent=0 // pred_check
    _
  $region31: #{tpu_custom_call.1} parent=0 // pred_check_branch
    %35 = sbr.rel (0) target = $region33
  $region32: #{tpu_custom_call.1} parent=0 // pred_region
    _
  $region33: #{tpu_custom_call.1} parent=0 // pred_fallthru
    _
  // Predicated region
  $region34: #{tpu_custom_call.1} parent=0 // pred_check
    _
  $region35: #{tpu_custom_call.1} parent=0 // pred_check_branch
    %37 = sbr.rel (0) target = $region37
  $region36: #{tpu_custom_call.1} parent=0 // pred_region
    _
  $region37: #{tpu_custom_call.1} parent=0 // pred_fallthru
    _
  // Predicated region
  $region38: #{tpu_custom_call.1} parent=0 // pred_check
    _
  $region39: #{tpu_custom_call.1} parent=0 // pred_check_branch
    %39 = sbr.rel (0) target = $region41
  $region40: #{tpu_custom_call.1} parent=0 // pred_region
    _
  $region41: #{tpu_custom_call.1} parent=0 // pred_fallthru
    _
  // Predicated region
  $region42: #{tpu_custom_call.1} parent=0 // pred_check
    _
  $region43: #{tpu_custom_call.1} parent=0 // pred_check_branch
    %41 = sbr.rel (0) target = $region45
  $region44: #{tpu_custom_call.1} parent=0 // pred_region
    _
  $region45: #{tpu_custom_call.1} parent=0 // pred_fallthru
    _
  // Predicated region
  $region46: #{tpu_custom_call.1} parent=0 // pred_check
    _
  $region47: #{tpu_custom_call.1} parent=0 // pred_check_branch
    %43 = sbr.rel (0) target = $region49
  $region48: #{tpu_custom_call.1} parent=0 // pred_region
    _
  $region49: #{tpu_custom_call.1} parent=0 // pred_fallthru
    _
  // Predicated region
  $region50: #{tpu_custom_call.1} parent=0 // pred_check
    _
  $region51: #{tpu_custom_call.1} parent=0 // pred_check_branch
    %45 = sbr.rel (0) target = $region53
  $region52: #{tpu_custom_call.1} parent=0 // pred_region
    _
  $region53: #{tpu_custom_call.1} parent=0 // pred_fallthru
    _
  // Predicated region
  $region54: #{tpu_custom_call.1} parent=0 // pred_check
    _
  $region55: #{tpu_custom_call.1} parent=0 // pred_check_branch
    %47 = sbr.rel (0) target = $region57
  $region56: #{tpu_custom_call.1} parent=0 // pred_region
    _
  $region57: #{tpu_custom_call.1} parent=0 // pred_fallthru
    _
  // Predicated region
  $region58: #{tpu_custom_call.1} parent=0 // pred_check
    _
  $region59: #{tpu_custom_call.1} parent=0 // pred_check_branch
    %49 = sbr.rel (0) target = $region61
  $region60: #{tpu_custom_call.1} parent=0 // pred_region
    _
  $region61: #{tpu_custom_call.1} parent=0 // pred_fallthru
    _
  %v51 = vld [vmem:[%s0] sm:$0xff]
  %52 = vxpose.xlu0.b32.start [1/16] %v51, 128
  %53 = vxpose.xlu0.b32.cont [2/16] 0.0, 128
  %54 = vxpose.xlu0.b32.cont [3/16] 0.0, 128
  %55 = vxpose.xlu0.b32.cont [4/16] 0.0, 128
  %56 = vxpose.xlu0.b32.cont [5/16] 0.0, 128
  %57 = vxpose.xlu0.b32.cont [6/16] 0.0, 128
  %58 = vxpose.xlu0.b32.cont [7/16] 0.0, 128
  %59 = vxpose.xlu0.b32.cont [8/16] 0.0, 128
  %60 = vxpose.xlu0.b32.cont [9/16] 0.0, 128
  %61 = vxpose.xlu0.b32.cont [10/16] 0.0, 128
  %62 = vxpose.xlu0.b32.cont [11/16] 0.0, 128
  %63 = vxpose.xlu0.b32.cont [12/16] 0.0, 128
  %64 = vxpose.xlu0.b32.cont [13/16] 0.0, 128
  %65 = vxpose.xlu0.b32.cont [14/16] 0.0, 128
  %66 = vxpose.xlu0.b32.cont [15/16] 0.0, 128
  %67 = vxpose.xlu0.b32.end [16/16] 0.0, 128
  %v68 = vpop.trf.xlu0
  %v69 = vpop.trf.xlu0
  %v70 = vpop.trf.xlu0
  %v71 = vpop.trf.xlu0
  %v72 = vpop.trf.xlu0
  %v73 = vpop.trf.xlu0
  %v74 = vpop.trf.xlu0
  %v75 = vpop.trf.xlu0
  %v76 = vpop.trf.xlu0
  %v77 = vpop.trf.xlu0
  %v78 = vpop.trf.xlu0
  %v79 = vpop.trf.xlu0
  %v80 = vpop.trf.xlu0
  %v81 = vpop.trf.xlu0
  %v82 = vpop.trf.xlu0
  %v83 = vpop.trf.xlu0
  %v84 = vld [vmem:[%s1] sm:$0xf]
  %v85 = vld [vmem:[%s1 + $0x4] sm:$0xf]
  %v86 = vld [vmem:[%s1 + $0x8] sm:$0xf]
  %v87 = vld [vmem:[%s1 + $0xc] sm:$0xf]
  %v88 = vpack.c.bf16 %v69, %v68
  %v89 = vld [vmem:[%s2] sm:$0xff]
  %v90 = vld [vmem:[%s2 + $0x8] sm:$0xff]
  %v91 = vld [vmem:[%s2 + $0x10] sm:$0xff]
  %v92 = vld [vmem:[%s2 + $0x18] sm:$0xff]
  %94 = vset.pattern.permute.xlu0 0
  %95 = vperm.xlu0 %94, %v89
  %v96 = vpop.permute.xlu0 %95
  %99 = vset.pattern.permute.xlu0 0
  %100 = vperm.xlu0 %99, %v90
  %v101 = vpop.permute.xlu0 %100
  %104 = vset.pattern.permute.xlu0 0
  %105 = vperm.xlu0 %104, %v91
  %v106 = vpop.permute.xlu0 %105
  %109 = vset.pattern.permute.xlu0 0
  %110 = vperm.xlu0 %109, %v92
  %v111 = vpop.permute.xlu0 %110
  %v117 = vunpack.c.l.b16 %v84
  %v118 = vunpack.c.l.b16 %v85
  %v119 = vunpack.c.l.b16 %v86
  %v120 = vunpack.c.l.b16 %v87
  %v121 = vpack.c.b16 %v118, %v117
  %v122 = vpack.c.b16 %v120, %v119
  %vm123 = vcmask 130048
  %v125 = vsel %vm123, %v121, 0
  %v128 = vsel %vm123, %v122, 0
  %130 = vmatpush.bf16.msra.mxu0 0
  %131 = vmatpush.bf16.msra.mxu0 0
  %132 = vmatpush.bf16.msra.mxu0 0
  %133 = vmatpush.bf16.msra.mxu0 0
  %134 = vmatpush.bf16.msra.mxu0 0
  %135 = vmatpush.bf16.msra.mxu0 0
  %136 = vmatpush.bf16.msra.mxu0 0
  %137 = vmatpush.bf16.msra.mxu0 %v88
  %138 = vmatmul.bf16.gmra.mxu0 %v125
  %v139 = vpop.f32.mrf.mxu0
  %v140 = vadd.f32 %v96, %v139
  %v141 = vpop.f32.mrf.mxu0
  %v142 = vadd.f32 %v101, %v141
  %143 = vmatmul.bf16.gmra.mxu0 %v128
  %v144 = vpop.f32.mrf.mxu0
  %v145 = vadd.f32 %v106, %v144
  %v146 = vpop.f32.mrf.mxu0
  %v147 = vadd.f32 %v111, %v146
  %148 = vdwg.mxu0
  %v149 = vmax.f32 %v140, 0.0
  %v150 = vmax.f32 %v142, 0.0
  %v151 = vmax.f32 %v145, 0.0
  %v152 = vmax.f32 %v147, 0.0
  %v153 = vld [vmem:[%s3] sm:$0xf]
  %v154 = vld [vmem:[%s3 + $0x4] sm:$0xf]
  %v155 = vld [vmem:[%s3 + $0x8] sm:$0xf]
  %v156 = vld [vmem:[%s3 + $0xc] sm:$0xf]
  %v157 = vld [vmem:[%s3 + $0x10] sm:$0xf]
  %v158 = vld [vmem:[%s3 + $0x14] sm:$0xf]
  %v159 = vld [vmem:[%s3 + $0x18] sm:$0xf]
  %v160 = vld [vmem:[%s3 + $0x1c] sm:$0xf]
  %v161 = vpack.c.bf16 %v150, %v149
  %v162 = vpack.c.bf16 %v152, %v151
  %v163 = vld [vmem:[%s4] sm:$0xff]
  %v164 = vld [vmem:[%s4 + $0x8] sm:$0xff]
  %v165 = vld [vmem:[%s4 + $0x10] sm:$0xff]
  %v166 = vld [vmem:[%s4 + $0x18] sm:$0xff]
  %v167 = vld [vmem:[%s4 + $0x20] sm:$0xff]
  %v168 = vld [vmem:[%s4 + $0x28] sm:$0xff]
  %v169 = vld [vmem:[%s4 + $0x30] sm:$0xff]
  %v170 = vld [vmem:[%s4 + $0x38] sm:$0xff]
  %172 = vset.pattern.permute.xlu0 0
  %173 = vperm.xlu0 %172, %v163
  %v174 = vpop.permute.xlu0 %173
  %177 = vset.pattern.permute.xlu0 0
  %178 = vperm.xlu0 %177, %v164
  %v179 = vpop.permute.xlu0 %178
  %182 = vset.pattern.permute.xlu0 0
  %183 = vperm.xlu0 %182, %v165
  %v184 = vpop.permute.xlu0 %183
  %187 = vset.pattern.permute.xlu0 0
  %188 = vperm.xlu0 %187, %v166
  %v189 = vpop.permute.xlu0 %188
  %192 = vset.pattern.permute.xlu0 0
  %193 = vperm.xlu0 %192, %v167
  %v194 = vpop.permute.xlu0 %193
  %197 = vset.pattern.permute.xlu0 0
  %198 = vperm.xlu0 %197, %v168
  %v199 = vpop.permute.xlu0 %198
  %202 = vset.pattern.permute.xlu0 0
  %203 = vperm.xlu0 %202, %v169
  %v204 = vpop.permute.xlu0 %203
  %207 = vset.pattern.permute.xlu0 0
  %208 = vperm.xlu0 %207, %v170
  %v209 = vpop.permute.xlu0 %208
  %v219 = vunpack.c.l.b16 %v153
  %v220 = vunpack.c.l.b16 %v154
  %v221 = vunpack.c.l.b16 %v155
  %v222 = vunpack.c.l.b16 %v156
  %v223 = vunpack.c.l.b16 %v157
  %v224 = vunpack.c.l.b16 %v158
  %v225 = vunpack.c.l.b16 %v159
  %v226 = vunpack.c.l.b16 %v160
  %v227 = vpack.c.b16 %v220, %v219
  %v228 = vpack.c.b16 %v222, %v221
  %v229 = vpack.c.b16 %v224, %v223
  %v230 = vpack.c.b16 %v226, %v225
  %vm231 = vcmask 261120
  %v233 = vsel %vm231, %v227, 0
  %v236 = vsel %vm231, %v228, 0
  %v239 = vsel %vm231, %v229, 0
  %v242 = vsel %vm231, %v230, 0
  %244 = vmatpush.bf16.msra.mxu0 0
  %245 = vmatpush.bf16.msra.mxu0 0
  %246 = vmatpush.bf16.msra.mxu0 0
  %247 = vmatpush.bf16.msra.mxu0 0
  %248 = vmatpush.bf16.msra.mxu0 0
  %249 = vmatpush.bf16.msra.mxu0 0
  %250 = vmatpush.bf16.msra.mxu0 %v162
  %251 = vmatpush.bf16.msra.mxu0 %v161
  %252 = vmatmul.bf16.gmra.mxu0 %v233
  %v253 = vpop.f32.mrf.mxu0
  %v254 = vadd.f32 %v174, %v253
  %v255 = vpop.f32.mrf.mxu0
  %v256 = vadd.f32 %v179, %v255
  %257 = vmatmul.bf16.gmra.mxu0 %v236
  %v258 = vpop.f32.mrf.mxu0
  %v259 = vadd.f32 %v184, %v258
  %v260 = vpop.f32.mrf.mxu0
  %v261 = vadd.f32 %v189, %v260
  %262 = vmatmul.bf16.gmra.mxu0 %v239
  %v263 = vpop.f32.mrf.mxu0
  %v264 = vadd.f32 %v194, %v263
  %v265 = vpop.f32.mrf.mxu0
  %v266 = vadd.f32 %v199, %v265
  %267 = vmatmul.bf16.gmra.mxu0 %v242
  %v268 = vpop.f32.mrf.mxu0
  %v269 = vadd.f32 %v204, %v268
  %v270 = vpop.f32.mrf.mxu0
  %v271 = vadd.f32 %v209, %v270
  %272 = vdwg.mxu0
  %v273 = vmax.f32 %v254, 0.0
  %v274 = vmax.f32 %v256, 0.0
  %v275 = vmax.f32 %v259, 0.0
  %v276 = vmax.f32 %v261, 0.0
  %v277 = vmax.f32 %v264, 0.0
  %v278 = vmax.f32 %v266, 0.0
  %v279 = vmax.f32 %v269, 0.0
  %v280 = vmax.f32 %v271, 0.0
  %v281 = vld [vmem:[%s5] sm:$0xf]
  %v282 = vld [vmem:[%s5 + $0x4] sm:$0xf]
  %v283 = vld [vmem:[%s5 + $0x8] sm:$0xf]
  %v284 = vld [vmem:[%s5 + $0xc] sm:$0xf]
  %v285 = vld [vmem:[%s5 + $0x10] sm:$0xf]
  %v286 = vld [vmem:[%s5 + $0x14] sm:$0xf]
  %v287 = vld [vmem:[%s5 + $0x18] sm:$0xf]
  %v288 = vld [vmem:[%s5 + $0x1c] sm:$0xf]
  %v289 = vpack.c.bf16 %v274, %v273
  %v290 = vpack.c.bf16 %v276, %v275
  %v291 = vpack.c.bf16 %v278, %v277
  %v292 = vpack.c.bf16 %v280, %v279
  %v293 = vld [vmem:[%s6] sm:$0xff]
  %v294 = vld [vmem:[%s6 + $0x8] sm:$0xff]
  %v295 = vld [vmem:[%s6 + $0x10] sm:$0xff]
  %v296 = vld [vmem:[%s6 + $0x18] sm:$0xff]
  %v297 = vld [vmem:[%s6 + $0x20] sm:$0xff]
  %v298 = vld [vmem:[%s6 + $0x28] sm:$0xff]
  %v299 = vld [vmem:[%s6 + $0x30] sm:$0xff]
  %v300 = vld [vmem:[%s6 + $0x38] sm:$0xff]
  %302 = vset.pattern.permute.xlu0 0
  %303 = vperm.xlu0 %302, %v293
  %v304 = vpop.permute.xlu0 %303
  %307 = vset.pattern.permute.xlu0 0
  %308 = vperm.xlu0 %307, %v294
  %v309 = vpop.permute.xlu0 %308
  %312 = vset.pattern.permute.xlu0 0
  %313 = vperm.xlu0 %312, %v295
  %v314 = vpop.permute.xlu0 %313
  %317 = vset.pattern.permute.xlu0 0
  %318 = vperm.xlu0 %317, %v296
  %v319 = vpop.permute.xlu0 %318
  %322 = vset.pattern.permute.xlu0 0
  %323 = vperm.xlu0 %322, %v297
  %v324 = vpop.permute.xlu0 %323
  %327 = vset.pattern.permute.xlu0 0
  %328 = vperm.xlu0 %327, %v298
  %v329 = vpop.permute.xlu0 %328
  %332 = vset.pattern.permute.xlu0 0
  %333 = vperm.xlu0 %332, %v299
  %v334 = vpop.permute.xlu0 %333
  %337 = vset.pattern.permute.xlu0 0
  %338 = vperm.xlu0 %337, %v300
  %v339 = vpop.permute.xlu0 %338
  %v349 = vunpack.c.l.b16 %v281
  %v350 = vunpack.c.l.b16 %v282
  %v351 = vunpack.c.l.b16 %v283
  %v352 = vunpack.c.l.b16 %v284
  %v353 = vunpack.c.l.b16 %v285
  %v354 = vunpack.c.l.b16 %v286
  %v355 = vunpack.c.l.b16 %v287
  %v356 = vunpack.c.l.b16 %v288
  %v357 = vpack.c.b16 %v350, %v349
  %v358 = vpack.c.b16 %v352, %v351
  %v359 = vpack.c.b16 %v354, %v353
  %v360 = vpack.c.b16 %v356, %v355
  %vm361 = vcmask 523264
  %v363 = vsel %vm361, %v357, 0
  %v366 = vsel %vm361, %v358, 0
  %v369 = vsel %vm361, %v359, 0
  %v372 = vsel %vm361, %v360, 0
  %374 = vmatpush.bf16.msra.mxu0 0
  %375 = vmatpush.bf16.msra.mxu0 0
  %376 = vmatpush.bf16.msra.mxu0 0
  %377 = vmatpush.bf16.msra.mxu0 0
  %378 = vmatpush.bf16.msra.mxu0 %v292
  %379 = vmatpush.bf16.msra.mxu0 %v291
  %380 = vmatpush.bf16.msra.mxu0 %v290
  %381 = vmatpush.bf16.msra.mxu0 %v289
  %382 = vmatmul.bf16.gmra.mxu0 %v363
  %v383 = vpop.f32.mrf.mxu0
  %v384 = vadd.f32 %v304, %v383
  %v385 = vpop.f32.mrf.mxu0
  %v386 = vadd.f32 %v309, %v385
  %387 = vmatmul.bf16.gmra.mxu0 %v366
  %v388 = vpop.f32.mrf.mxu0
  %v389 = vadd.f32 %v314, %v388
  %v390 = vpop.f32.mrf.mxu0
  %v391 = vadd.f32 %v319, %v390
  %392 = vmatmul.bf16.gmra.mxu0 %v369
  %v393 = vpop.f32.mrf.mxu0
  %v394 = vadd.f32 %v324, %v393
  %v395 = vpop.f32.mrf.mxu0
  %v396 = vadd.f32 %v329, %v395
  %397 = vmatmul.bf16.gmra.mxu0 %v372
  %v398 = vpop.f32.mrf.mxu0
  %v399 = vadd.f32 %v334, %v398
  %v400 = vpop.f32.mrf.mxu0
  %v401 = vadd.f32 %v339, %v400
  %402 = vdwg.mxu0
  %v403 = vmax.f32 %v384, 0.0
  %v404 = vmax.f32 %v386, 0.0
  %v405 = vmax.f32 %v389, 0.0
  %v406 = vmax.f32 %v391, 0.0
  %v407 = vmax.f32 %v394, 0.0
  %v408 = vmax.f32 %v396, 0.0
  %v409 = vmax.f32 %v399, 0.0
  %v410 = vmax.f32 %v401, 0.0
  %v411 = vld [vmem:[%s7] sm:$0xf]
  %v412 = vld [vmem:[%s7 + $0x4] sm:$0xf]
  %v413 = vld [vmem:[%s7 + $0x8] sm:$0xf]
  %v414 = vld [vmem:[%s7 + $0xc] sm:$0xf]
  %v415 = vpack.c.bf16 %v404, %v403
  %v416 = vpack.c.bf16 %v406, %v405
  %v417 = vpack.c.bf16 %v408, %v407
  %v418 = vpack.c.bf16 %v410, %v409
  %v419 = vld [vmem:[%s8] sm:$0xff]
  %v420 = vld [vmem:[%s8 + $0x8] sm:$0xff]
  %v421 = vld [vmem:[%s8 + $0x10] sm:$0xff]
  %v422 = vld [vmem:[%s8 + $0x18] sm:$0xff]
  %424 = vset.pattern.permute.xlu0 0
  %425 = vperm.xlu0 %424, %v419
  %v426 = vpop.permute.xlu0 %425
  %429 = vset.pattern.permute.xlu0 0
  %430 = vperm.xlu0 %429, %v420
  %v431 = vpop.permute.xlu0 %430
  %434 = vset.pattern.permute.xlu0 0
  %435 = vperm.xlu0 %434, %v421
  %v436 = vpop.permute.xlu0 %435
  %439 = vset.pattern.permute.xlu0 0
  %440 = vperm.xlu0 %439, %v422
  %v441 = vpop.permute.xlu0 %440
  %v447 = vunpack.c.l.b16 %v411
  %v448 = vunpack.c.l.b16 %v412
  %v449 = vunpack.c.l.b16 %v413
  %v450 = vunpack.c.l.b16 %v414
  %v451 = vpack.c.b16 %v448, %v447
  %v452 = vpack.c.b16 %v450, %v449
  %v454 = vsel %vm361, %v451, 0
  %v457 = vsel %vm361, %v452, 0
  %459 = vmatpush.bf16.msra.mxu0 0
  %460 = vmatpush.bf16.msra.mxu0 0
  %461 = vmatpush.bf16.msra.mxu0 0
  %462 = vmatpush.bf16.msra.mxu0 0
  %463 = vmatpush.bf16.msra.mxu0 %v418
  %464 = vmatpush.bf16.msra.mxu0 %v417
  %465 = vmatpush.bf16.msra.mxu0 %v416
  %466 = vmatpush.bf16.msra.mxu0 %v415
  %467 = vmatmul.bf16.gmra.mxu0 %v454
  %v468 = vpop.f32.mrf.mxu0
  %v469 = vadd.f32 %v426, %v468
  %v470 = vpop.f32.mrf.mxu0
  %v471 = vadd.f32 %v431, %v470
  %472 = vmatmul.bf16.gmra.mxu0 %v457
  %v473 = vpop.f32.mrf.mxu0
  %v474 = vadd.f32 %v436, %v473
  %v475 = vpop.f32.mrf.mxu0
  %v476 = vadd.f32 %v441, %v475
  %477 = vdwg.mxu0
  %v478 = vmax.f32 %v469, 0.0
  %v479 = vmax.f32 %v471, 0.0
  %v480 = vmax.f32 %v474, 0.0
  %v481 = vmax.f32 %v476, 0.0
  %v482 = vld [vmem:[%s9] sm:$0xf]
  %v483 = vld [vmem:[%s9 + $0x4] sm:$0xf]
  %v484 = vld [vmem:[%s9 + $0x8] sm:$0xf]
  %v485 = vld [vmem:[%s9 + $0xc] sm:$0xf]
  %v486 = vpack.c.bf16 %v479, %v478
  %v487 = vpack.c.bf16 %v481, %v480
  %v488 = vld [vmem:[%s10] sm:$0xff]
  %v489 = vld [vmem:[%s10 + $0x8] sm:$0xff]
  %v490 = vld [vmem:[%s10 + $0x10] sm:$0xff]
  %v491 = vld [vmem:[%s10 + $0x18] sm:$0xff]
  %493 = vset.pattern.permute.xlu0 0
  %494 = vperm.xlu0 %493, %v488
  %v495 = vpop.permute.xlu0 %494
  %498 = vset.pattern.permute.xlu0 0
  %499 = vperm.xlu0 %498, %v489
  %v500 = vpop.permute.xlu0 %499
  %503 = vset.pattern.permute.xlu0 0
  %504 = vperm.xlu0 %503, %v490
  %v505 = vpop.permute.xlu0 %504
  %508 = vset.pattern.permute.xlu0 0
  %509 = vperm.xlu0 %508, %v491
  %v510 = vpop.permute.xlu0 %509
  %v516 = vunpack.c.l.b16 %v482
  %v517 = vunpack.c.l.b16 %v483
  %v518 = vunpack.c.l.b16 %v484
  %v519 = vunpack.c.l.b16 %v485
  %v520 = vpack.c.b16 %v517, %v516
  %v521 = vpack.c.b16 %v519, %v518
  %v523 = vsel %vm231, %v520, 0
  %v526 = vsel %vm231, %v521, 0
  %528 = vmatpush.bf16.msra.mxu0 0
  %529 = vmatpush.bf16.msra.mxu0 0
  %530 = vmatpush.bf16.msra.mxu0 0
  %531 = vmatpush.bf16.msra.mxu0 0
  %532 = vmatpush.bf16.msra.mxu0 0
  %533 = vmatpush.bf16.msra.mxu0 0
  %534 = vmatpush.bf16.msra.mxu0 %v487
  %535 = vmatpush.bf16.msra.mxu0 %v486
  %536 = vmatmul.bf16.gmra.mxu0 %v523
  %v537 = vpop.f32.mrf.mxu0
  %v538 = vadd.f32 %v495, %v537
  %v539 = vpop.f32.mrf.mxu0
  %v540 = vadd.f32 %v500, %v539
  %541 = vmatmul.bf16.gmra.mxu0 %v526
  %v542 = vpop.f32.mrf.mxu0
  %v543 = vadd.f32 %v505, %v542
  %v544 = vpop.f32.mrf.mxu0
  %v545 = vadd.f32 %v510, %v544
  %546 = vdwg.mxu0
  %v547 = vmax.f32 %v538, 0.0
  %v548 = vmax.f32 %v540, 0.0
  %v549 = vmax.f32 %v543, 0.0
  %v550 = vmax.f32 %v545, 0.0
  %v551 = vld [vmem:[%s11] sm:$0xf]
  %v552 = vld [vmem:[%s11 + $0x4] sm:$0xf]
  %v553 = vpack.c.bf16 %v548, %v547
  %v554 = vpack.c.bf16 %v550, %v549
  %v555 = vld [vmem:[%s12] sm:$0xff]
  %v556 = vld [vmem:[%s12 + $0x8] sm:$0xff]
  %558 = vset.pattern.permute.xlu0 0
  %559 = vperm.xlu0 %558, %v555
  %v560 = vpop.permute.xlu0 %559
  %563 = vset.pattern.permute.xlu0 0
  %564 = vperm.xlu0 %563, %v556
  %v565 = vpop.permute.xlu0 %564
  %v569 = vunpack.c.l.b16 %v551
  %v570 = vunpack.c.l.b16 %v552
  %v571 = vpack.c.b16 %v570, %v569
  %v573 = vsel %vm231, %v571, 0
  %575 = vmatpush.bf16.msra.mxu0 0
  %576 = vmatpush.bf16.msra.mxu0 0
  %577 = vmatpush.bf16.msra.mxu0 0
  %578 = vmatpush.bf16.msra.mxu0 0
  %579 = vmatpush.bf16.msra.mxu0 0
  %580 = vmatpush.bf16.msra.mxu0 0
  %581 = vmatpush.bf16.msra.mxu0 %v554
  %582 = vmatpush.bf16.msra.mxu0 %v553
  %583 = vmatmul.bf16.gmra.mxu0 %v573
  %v584 = vpop.f32.mrf.mxu0
  %v585 = vadd.f32 %v560, %v584
  %v586 = vpop.f32.mrf.mxu0
  %v587 = vadd.f32 %v565, %v586
  %588 = vdwg.mxu0
  %v589 = vmax.f32 %v585, 0.0
  %v590 = vmax.f32 %v587, 0.0
  %v591 = vld [vmem:[%s13] sm:$0xf]
  %v592 = vpack.c.bf16 %v590, %v589
  %v593 = vld [vmem:[%s14] sm:$0xff]
  %595 = vset.pattern.permute.xlu0 0
  %596 = vperm.xlu0 %595, %v593
  %v597 = vpop.permute.xlu0 %596
  %v600 = vsel %vm123, %v591, 0
  %602 = vmatpush.bf16.msra.mxu0 0
  %603 = vmatpush.bf16.msra.mxu0 0
  %604 = vmatpush.bf16.msra.mxu0 0
  %605 = vmatpush.bf16.msra.mxu0 0
  %606 = vmatpush.bf16.msra.mxu0 0
  %607 = vmatpush.bf16.msra.mxu0 0
  %608 = vmatpush.bf16.msra.mxu0 0
  %609 = vmatpush.bf16.msra.mxu0 %v592
  %610 = vmatmul.bf16.gmra.mxu0 %v600
  %v611 = vpop.f32.mrf.mxu0
  %v612 = vadd.f32 %v597, %v611
  %v613 = vpop.f32.mrf.mxu0
  %614 = vdwg.mxu0
  %615 = vxpose.xlu0.b32.start [1/16] %v612, 128
  %616 = vxpose.xlu0.b32.cont [2/16] 0.0, 128
  %617 = vxpose.xlu0.b32.cont [3/16] 0.0, 128
  %618 = vxpose.xlu0.b32.cont [4/16] 0.0, 128
  %619 = vxpose.xlu0.b32.cont [5/16] 0.0, 128
  %620 = vxpose.xlu0.b32.cont [6/16] 0.0, 128
  %621 = vxpose.xlu0.b32.cont [7/16] 0.0, 128
  %622 = vxpose.xlu0.b32.cont [8/16] 0.0, 128
  %623 = vxpose.xlu0.b32.cont [9/16] 0.0, 128
  %624 = vxpose.xlu0.b32.cont [10/16] 0.0, 128
  %625 = vxpose.xlu0.b32.cont [11/16] 0.0, 128
  %626 = vxpose.xlu0.b32.cont [12/16] 0.0, 128
  %627 = vxpose.xlu0.b32.cont [13/16] 0.0, 128
  %628 = vxpose.xlu0.b32.cont [14/16] 0.0, 128
  %629 = vxpose.xlu0.b32.cont [15/16] 0.0, 128
  %630 = vxpose.xlu0.b32.end [16/16] 0.0, 128
  %v631 = vpop.trf.xlu0
  %v632 = vpop.trf.xlu0
  %v633 = vpop.trf.xlu0
  %v634 = vpop.trf.xlu0
  %v635 = vpop.trf.xlu0
  %v636 = vpop.trf.xlu0
  %v637 = vpop.trf.xlu0
  %v638 = vpop.trf.xlu0
  %v639 = vpop.trf.xlu0
  %v640 = vpop.trf.xlu0
  %v641 = vpop.trf.xlu0
  %v642 = vpop.trf.xlu0
  %v643 = vpop.trf.xlu0
  %v644 = vpop.trf.xlu0
  %v645 = vpop.trf.xlu0
  %v646 = vpop.trf.xlu0
  %vm647 = vcmask 31744
  %648 = vst.msk [vmem:[%s15] sm:$0xff] %vm647, %v631
  // Predicated region
  $region62: #{tpu_custom_call.1} parent=0 // pred_check
    _
  $region63: #{tpu_custom_call.1} parent=0 // pred_check_branch
    %650 = sbr.rel (0) target = $region65
  $region64: #{tpu_custom_call.1} parent=0 // pred_region
    _
  $region65: #{tpu_custom_call.1} parent=0 // pred_fallthru
    _
  // Predicated region
  $region66: #{tpu_custom_call.1} parent=0 // pred_check
    _
  $region67: #{tpu_custom_call.1} parent=0 // pred_check_branch
    %652 = sbr.rel (0) target = $region69
  $region68: #{tpu_custom_call.1} parent=0 // pred_region
    _
  $region69: #{tpu_custom_call.1} parent=0 // pred_fallthru
    _

</llo_original>
